<compile_context>
chip_gen: v7x
topology: tpu7x:2x2x1
jax: 0.10.0
libtpu: 0.0.40
codegen_flags: <defaults>
</compile_context>

<pallas_src>
import jax
import jax.numpy as jnp
from jax.experimental import pallas as pl
from jax.experimental.pallas import tpu as pltpu


def _round_up(x, m):
    return ((x + m - 1) // m) * m


def _vmem_capacity_bytes():
    try:
        return int(pltpu.get_tpu_info().vmem_capacity_bytes)
    except Exception:
        return 64 * 1024 * 1024  # conservative: v7x per-TensorCore VMEM


def _pick_batch_tile(batch, seq_len, emb_dim, kmax, cpad, npad, vmem_cap):
    # Padded VMEM footprint per batch row (the emb block lane-pads E -> 128).
    e_pad = _round_up(emb_dim, 128)
    emb_row = seq_len * e_pad * 2              # bf16 emb rows (double-buffered)
    p_row = seq_len * kmax * cpad * 4          # stacked conv matmul result, f32
    acc_row = seq_len * cpad * 4               # shift-add accumulator, f32
    out_row = npad * 4                         # f32 output (double-buffered)
    per_row = 2 * emb_row + p_row + 2 * acc_row + 2 * out_row
    budget = max(vmem_cap // 3, 8 * 1024 * 1024)
    tb = max(8, budget // per_row)
    # Keep >= 4 grid steps on large batches (>= 2 per core on dual-TC parts,
    # and the compute/DMA pipeline has something to overlap with).
    if batch >= 32:
        tb = min(tb, max(8, pl.cdiv(batch, 4)))
    tb = min(tb, 2048)
    if batch <= tb:
        return batch
    return max(8, (tb // 8) * 8)


def _make_kernel(tb, seq_len, kmax, cpad):
    ncomb = kmax * cpad

    def kernel(emb_ref, w_ref, mask_ref, bias_ref, fcw_ref, fcb_ref, out_ref):
        # One MXU stream for every branch and every tap: (TB*L, E) x (E, kmax*Cpad).
        p = jnp.dot(emb_ref[...], w_ref[...],
                    preferred_element_type=jnp.float32)        # (TB*L, kmax*Cpad)
        p = p.reshape(tb, seq_len, ncomb)                      # minor dim unchanged
        # Shift-add over taps: acc[:, t, :] = sum_j P_j[:, t+j, :].
        # Lane slices at 128-multiples are whole-vreg selects; the roll is a
        # small shift on lane-dense f32 data.  Wrapped rows land only on
        # positions that are masked below.
        acc = p[:, :, 0:cpad]
        for j in range(1, kmax):
            acc = acc + jnp.roll(p[:, :, j * cpad:(j + 1) * cpad], -j, axis=1)
        # Mask per-branch invalid positions, then global max-pool over length.
        pooled = jnp.max(acc + mask_ref[...], axis=1)          # (TB, Cpad)
        # Bias + ReLU AFTER the pool (bias constant over length, ReLU monotone).
        pooled = jnp.maximum(pooled + bias_ref[...], 0.0)
        # fc: bf16 weights/activations, f32 accumulation, full-lane output store.
        logits = jnp.dot(pooled.astype(jnp.bfloat16), fcw_ref[...],
                         preferred_element_type=jnp.float32)   # (TB, NPad)
        out_ref[...] = logits + fcb_ref[...]

    return kernel


def account_desc_cnn_forward(tokens, embedding, conv_weights, conv_biases,
                             fc_w, fc_b, kernel_sizes):
    """AccountDescCNN forward.

    tokens:        (B, L) int32
    embedding:     (vocab, E) f32
    conv_weights:  list of (C, E, k) f32   (PyTorch Conv1d weight layout)
    conv_biases:   list of (C,) f32
    fc_w:          (num_classes, C * nk) f32   (PyTorch Linear weight layout)
    fc_b:          (num_classes,) f32
    Returns (B, num_classes) f32 logits.
    """
    B, L = tokens.shape
    E = embedding.shape[1]
    C = conv_weights[0].shape[0]
    nk = len(kernel_sizes)
    kmax = max(kernel_sizes)
    num_classes = fc_w.shape[0]
    ccomb = nk * C
    cpad = _round_up(ccomb, 128)
    npad = _round_up(num_classes, 128)
    assert L >= kmax, "sequence length must be >= the largest kernel size"

    # Embedding gather (plain-JAX glue, fusible into the kernel input stream),
    # flattened so the in-kernel conv matmul is a plain rank-2 MXU contraction.
    emb = jnp.take(embedding, tokens, axis=0).astype(jnp.bfloat16)
    emb = emb.reshape(B * L, E)

    # Combined conv weight / bias / validity mask (concat order == branch order).
    w_all = jnp.zeros((E, kmax * cpad), jnp.float32)
    bias_comb = jnp.zeros((1, cpad), jnp.float32)
    mask = jnp.zeros((L, cpad), jnp.float32)
    for idx, (w, b, k) in enumerate(zip(conv_weights, conv_biases, kernel_sizes)):
        lo = idx * C
        for j in range(k):
            w_all = w_all.at[:, j * cpad + lo:j * cpad + lo + C].set(
                jnp.transpose(w[:, :, j]).astype(jnp.float32))      # (E, C)
        bias_comb = bias_comb.at[0, lo:lo + C].set(b.astype(jnp.float32))
        # positions t >= L - k + 1 are not valid conv outputs for this branch
        mask = mask.at[L - k + 1:, lo:lo + C].set(-1e30)
    w_all = w_all.astype(jnp.bfloat16)

    # fc weight, padded on both axes, bf16 (f32 accumulation in the kernel).
    fc_wc = jnp.zeros((cpad, npad), jnp.float32)
    fc_wc = fc_wc.at[:ccomb, :num_classes].set(
        jnp.transpose(fc_w).astype(jnp.float32))
    fc_wc = fc_wc.astype(jnp.bfloat16)
    fc_bp = jnp.zeros((1, npad), jnp.float32)
    fc_bp = fc_bp.at[0, :num_classes].set(fc_b.reshape(-1).astype(jnp.float32))

    vmem_cap = _vmem_capacity_bytes()
    tb = _pick_batch_tile(B, L, E, kmax, cpad, npad, vmem_cap)
    grid = (pl.cdiv(B, tb),)

    inputs = [emb, w_all, mask, bias_comb, fc_wc, fc_bp]
    in_specs = [pl.BlockSpec((tb * L, E), lambda i: (i, 0))]
    in_specs += [pl.BlockSpec(x.shape, lambda i: (0, 0)) for x in inputs[1:]]
    out_spec = pl.BlockSpec((tb, npad), lambda i: (i, 0))

    # Roofline hints for the XLA scheduler.
    flops = 2 * B * L * E * (kmax * cpad) + 2 * B * cpad * npad
    weights_bytes = sum(int(x.size) * x.dtype.itemsize for x in inputs[1:])
    bytes_accessed = int(emb.size) * 2 + weights_bytes + B * npad * 4
    cost = pl.CostEstimate(flops=int(flops), transcendentals=0,
                           bytes_accessed=int(bytes_accessed))

    # Padded-layout-aware VMEM need; cap the scoped limit below physical VMEM.
    e_pad = _round_up(E, 128)
    need = (2 * tb * L * e_pad * 2               # emb block, double-buffered
            + tb * L * kmax * cpad * 4           # stacked conv result
            + 2 * tb * L * cpad * 4              # shift-add acc + masked copy
            + 2 * tb * npad * 4                  # output, double-buffered
            + 2 * weights_bytes                  # resident weights (2x: default buffering)
            + (2 << 20))                         # Mosaic internal scratch slack
    vmem_limit = int(min(int(0.8 * vmem_cap), max(32 * 1024 * 1024, 2 * need)))

    kernel = _make_kernel(tb, L, kmax, cpad)

    out_pad = pl.pallas_call(
        kernel,
        out_shape=jax.ShapeDtypeStruct((B, npad), jnp.float32),
        grid=grid,
        in_specs=in_specs,
        out_specs=out_spec,
        compiler_params=pltpu.CompilerParams(
            dimension_semantics=("parallel",),
            vmem_limit_bytes=vmem_limit,
            allow_input_fusion=[True] + [False] * (len(inputs) - 1)),
        cost_estimate=cost,
    )(*inputs)
    return out_pad[:, :num_classes]


def _reference(tokens, embedding, conv_weights, conv_biases, fc_w, fc_b,
               kernel_sizes):
    """Plain-JAX f32 reference matching the PyTorch forward."""
    emb = jnp.take(embedding, tokens, axis=0)                # (B, L, E)
    L = emb.shape[1]
    pooled = []
    for w, b, k in zip(conv_weights, conv_biases, kernel_sizes):   # w: (C, E, k)
        l_out = L - k + 1
        acc = jnp.zeros((emb.shape[0], l_out, w.shape[0]), jnp.float32)
        for j in range(k):
            acc = acc + jnp.einsum('ble,ce->blc', emb[:, j:j + l_out, :], w[:, :, j])
        acc = jnp.maximum(acc + b[None, None, :], 0.0)
        pooled.append(jnp.max(acc, axis=1))
    feat = jnp.concatenate(pooled, axis=-1)                  # (B, nk*C)
    return feat @ fc_w.T + fc_b[None, :]


if __name__ == "__main__":
    # Small, module-consistent shapes.
    vocab_size = 50
    embedding_dim = 32
    num_classes = 5
    kernel_sizes = (2, 3, 4)
    out_channels = 16
    B, L = 2, 8

    key = jax.random.PRNGKey(0)
    keys = jax.random.split(key, 4 + 2 * len(kernel_sizes))

    tokens = jax.random.randint(keys[0], (B, L), 0, vocab_size, dtype=jnp.int32)
    embedding = jax.random.normal(keys[1], (vocab_size, embedding_dim), jnp.float32)

    conv_ws, conv_bs = [], []
    for i, k in enumerate(kernel_sizes):
        # PyTorch Conv1d weight layout: (out_channels, in_channels, kernel_size)
        conv_ws.append(0.1 * jax.random.normal(
            keys[2 + 2 * i], (out_channels, embedding_dim, k), jnp.float32))
        conv_bs.append(0.1 * jax.random.normal(
            keys[3 + 2 * i], (out_channels,), jnp.float32))

    # PyTorch Linear weight layout: (out_features, in_features)
    fc_w = 0.1 * jax.random.normal(
        keys[-1], (num_classes, out_channels * len(kernel_sizes)), jnp.float32)
    fc_b = jnp.zeros((num_classes,), jnp.float32)

    out = account_desc_cnn_forward(tokens, embedding, conv_ws, conv_bs,
                                   fc_w, fc_b, kernel_sizes)
    out = jax.block_until_ready(out)
    assert out.shape == (B, num_classes)

    # Relaxed tolerance: kernel uses bf16 activations/weights with f32 accumulation.
    ref = _reference(tokens, embedding, conv_ws, conv_bs, fc_w, fc_b, kernel_sizes)
    err = float(jnp.max(jnp.abs(out - ref)))
    assert err < 0.1, f"max abs error too large: {err}"
    print("KERNEL_OK")
</pallas_src>

<mosaic_0001>
module attributes {stable_mosaic.version = 11 : i64} {
  func.func @kernel(%arg0: i32, %arg1: memref<16x32xbf16, #tpu.memory_space<vmem>>, %arg2: memref<32x512xbf16, #tpu.memory_space<vmem>>, %arg3: memref<8x128xf32, #tpu.memory_space<vmem>>, %arg4: memref<1x128xf32, #tpu.memory_space<vmem>>, %arg5: memref<128x128xbf16, #tpu.memory_space<vmem>>, %arg6: memref<1x128xf32, #tpu.memory_space<vmem>>, %arg7: memref<2x128xf32, #tpu.memory_space<vmem>>) attributes {dimension_semantics = [#tpu.dimension_semantics<parallel>], iteration_bounds = array<i64: 1>, scalar_prefetch = 0 : i64, scratch_operands = 0 : i64, tpu.core_type = #tpu.core_type<tc>, window_params = [{transform_indices = @transform_0, window_bounds = array<i64: 16, 32>}, {pipeline_mode = #tpu.pipeline_mode<synchronous>, transform_indices = @transform_1, window_bounds = array<i64: 32, 512>}, {pipeline_mode = #tpu.pipeline_mode<synchronous>, transform_indices = @transform_2, window_bounds = array<i64: 8, 128>}, {pipeline_mode = #tpu.pipeline_mode<synchronous>, transform_indices = @transform_3, window_bounds = array<i64: 1, 128>}, {pipeline_mode = #tpu.pipeline_mode<synchronous>, transform_indices = @transform_4, window_bounds = array<i64: 128, 128>}, {pipeline_mode = #tpu.pipeline_mode<synchronous>, transform_indices = @transform_5, window_bounds = array<i64: 1, 128>}, {transform_indices = @transform_6, window_bounds = array<i64: 2, 128>}]} {
    %c0 = arith.constant 0 : index
    %c0_0 = arith.constant 0 : index
    %0 = vector.load %arg1[%c0, %c0_0] : memref<16x32xbf16, #tpu.memory_space<vmem>>, vector<16x32xbf16>
    %c0_1 = arith.constant 0 : index
    %c0_2 = arith.constant 0 : index
    %1 = vector.load %arg2[%c0_1, %c0_2] : memref<32x512xbf16, #tpu.memory_space<vmem>>, vector<32x512xbf16>
    %cst = arith.constant dense<0.000000e+00> : vector<16x512xf32>
    %2 = tpu.matmul %0, %1, %cst {dimension_numbers = #tpu.dot_dimension_numbers<[1], [0], [0], [1], [0, 0, 1, 1], [], []>} : vector<16x32xbf16>, vector<32x512xbf16>, vector<16x512xf32> -> vector<16x512xf32>
    %3 = vector.shape_cast %2 : vector<16x512xf32> to vector<2x8x512xf32>
    %4 = vector.extract_strided_slice %3 {offsets = [0, 0, 0], sizes = [2, 8, 128], strides = [1, 1, 1]} : vector<2x8x512xf32> to vector<2x8x128xf32>
    %5 = vector.extract_strided_slice %3 {offsets = [0, 0, 128], sizes = [2, 8, 128], strides = [1, 1, 1]} : vector<2x8x512xf32> to vector<2x8x128xf32>
    %6 = vector.extract_strided_slice %5 {offsets = [0, 1, 0], sizes = [2, 7, 128], strides = [1, 1, 1]} : vector<2x8x128xf32> to vector<2x7x128xf32>
    %7 = vector.extract_strided_slice %5 {offsets = [0, 0, 0], sizes = [2, 1, 128], strides = [1, 1, 1]} : vector<2x8x128xf32> to vector<2x1x128xf32>
    %8 = tpu.concatenate %6, %7 in 1 : vector<2x7x128xf32>, vector<2x1x128xf32> -> vector<2x8x128xf32>
    %9 = arith.addf %4, %8 : vector<2x8x128xf32>
    %10 = vector.extract_strided_slice %3 {offsets = [0, 0, 256], sizes = [2, 8, 128], strides = [1, 1, 1]} : vector<2x8x512xf32> to vector<2x8x128xf32>
    %11 = vector.extract_strided_slice %10 {offsets = [0, 2, 0], sizes = [2, 6, 128], strides = [1, 1, 1]} : vector<2x8x128xf32> to vector<2x6x128xf32>
    %12 = vector.extract_strided_slice %10 {offsets = [0, 0, 0], sizes = [2, 2, 128], strides = [1, 1, 1]} : vector<2x8x128xf32> to vector<2x2x128xf32>
    %13 = tpu.concatenate %11, %12 in 1 : vector<2x6x128xf32>, vector<2x2x128xf32> -> vector<2x8x128xf32>
    %14 = arith.addf %9, %13 : vector<2x8x128xf32>
    %15 = vector.extract_strided_slice %3 {offsets = [0, 0, 384], sizes = [2, 8, 128], strides = [1, 1, 1]} : vector<2x8x512xf32> to vector<2x8x128xf32>
    %16 = vector.extract_strided_slice %15 {offsets = [0, 3, 0], sizes = [2, 5, 128], strides = [1, 1, 1]} : vector<2x8x128xf32> to vector<2x5x128xf32>
    %17 = vector.extract_strided_slice %15 {offsets = [0, 0, 0], sizes = [2, 3, 128], strides = [1, 1, 1]} : vector<2x8x128xf32> to vector<2x3x128xf32>
    %18 = tpu.concatenate %16, %17 in 1 : vector<2x5x128xf32>, vector<2x3x128xf32> -> vector<2x8x128xf32>
    %19 = arith.addf %14, %18 : vector<2x8x128xf32>
    %c0_3 = arith.constant 0 : index
    %c0_4 = arith.constant 0 : index
    %20 = vector.load %arg3[%c0_3, %c0_4] : memref<8x128xf32, #tpu.memory_space<vmem>>, vector<8x128xf32>
    %21 = vector.shape_cast %20 : vector<8x128xf32> to vector<1x8x128xf32>
    %22 = vector.broadcast %21 : vector<1x8x128xf32> to vector<2x8x128xf32>
    %23 = arith.addf %19, %22 : vector<2x8x128xf32>
    %cst_5 = arith.constant dense<0xFF800000> : vector<2x128xf32>
    %24 = vector.multi_reduction <maximumf>, %23, %cst_5 [1] : vector<2x8x128xf32> to vector<2x128xf32>
    %c0_6 = arith.constant 0 : index
    %c0_7 = arith.constant 0 : index
    %25 = vector.load %arg4[%c0_6, %c0_7] : memref<1x128xf32, #tpu.memory_space<vmem>>, vector<1x128xf32>
    %26 = vector.broadcast %25 : vector<1x128xf32> to vector<2x128xf32>
    %27 = arith.addf %24, %26 : vector<2x128xf32>
    %cst_8 = arith.constant 0.000000e+00 : f32
    %28 = vector.broadcast %cst_8 : f32 to vector<2x128xf32>
    %29 = arith.maximumf %27, %28 : vector<2x128xf32>
    %30 = arith.truncf %29 : vector<2x128xf32> to vector<2x128xbf16>
    %c0_9 = arith.constant 0 : index
    %c0_10 = arith.constant 0 : index
    %31 = vector.load %arg5[%c0_9, %c0_10] : memref<128x128xbf16, #tpu.memory_space<vmem>>, vector<128x128xbf16>
    %cst_11 = arith.constant dense<0.000000e+00> : vector<2x128xf32>
    %32 = tpu.matmul %30, %31, %cst_11 {dimension_numbers = #tpu.dot_dimension_numbers<[1], [0], [0], [1], [0, 0, 1, 1], [], []>} : vector<2x128xbf16>, vector<128x128xbf16>, vector<2x128xf32> -> vector<2x128xf32>
    %c0_12 = arith.constant 0 : index
    %c0_13 = arith.constant 0 : index
    %33 = vector.load %arg6[%c0_12, %c0_13] : memref<1x128xf32, #tpu.memory_space<vmem>>, vector<1x128xf32>
    %34 = vector.broadcast %33 : vector<1x128xf32> to vector<2x128xf32>
    %35 = arith.addf %32, %34 : vector<2x128xf32>
    %c0_14 = arith.constant 0 : index
    %c0_15 = arith.constant 0 : index
    %36 = vector.load %arg7[%c0_14, %c0_15] : memref<2x128xf32, #tpu.memory_space<vmem>>, vector<2x128xf32>
    tpu.vector_store %arg7[%c0_14, %c0_15], %35 {strides = array<i32>} : memref<2x128xf32, #tpu.memory_space<vmem>>, vector<2x128xf32>,
    return
  }
  func.func @transform_0(%arg0: i32) -> (i32, i32) {
    %c0_i32 = arith.constant 0 : i32
    %c0_i32_0 = arith.constant 0 : i32
    return %arg0, %c0_i32 : i32, i32
  }
  func.func @transform_1(%arg0: i32) -> (i32, i32) {
    %c0_i32 = arith.constant 0 : i32
    %c0_i32_0 = arith.constant 0 : i32
    %c0_i32_1 = arith.constant 0 : i32
    return %c0_i32, %c0_i32_0 : i32, i32
  }
  func.func @transform_2(%arg0: i32) -> (i32, i32) {
    %c0_i32 = arith.constant 0 : i32
    %c0_i32_0 = arith.constant 0 : i32
    %c0_i32_1 = arith.constant 0 : i32
    return %c0_i32, %c0_i32_0 : i32, i32
  }
  func.func @transform_3(%arg0: i32) -> (i32, i32) {
    %c0_i32 = arith.constant 0 : i32
    %c0_i32_0 = arith.constant 0 : i32
    %c0_i32_1 = arith.constant 0 : i32
    return %c0_i32, %c0_i32_0 : i32, i32
  }
  func.func @transform_4(%arg0: i32) -> (i32, i32) {
    %c0_i32 = arith.constant 0 : i32
    %c0_i32_0 = arith.constant 0 : i32
    %c0_i32_1 = arith.constant 0 : i32
    return %c0_i32, %c0_i32_0 : i32, i32
  }
  func.func @transform_5(%arg0: i32) -> (i32, i32) {
    %c0_i32 = arith.constant 0 : i32
    %c0_i32_0 = arith.constant 0 : i32
    %c0_i32_1 = arith.constant 0 : i32
    return %c0_i32, %c0_i32_0 : i32, i32
  }
  func.func @transform_6(%arg0: i32) -> (i32, i32) {
    %c0_i32 = arith.constant 0 : i32
    %c0_i32_0 = arith.constant 0 : i32
    return %arg0, %c0_i32 : i32, i32
  }
}

</mosaic_0001>

<llo_original>
// kernel: tpu_custom_call.1
$region0: #{tpu_custom_call.1}
  #allocation0 [shape = 'u32[]', space=smem, size = 0x4, offset = 0x4, fixed_abs, tag = 'smem constant byte address 0x4 - core index']
  #allocation1 [shape = 'u32[144,128]{1,0:T(1,128)}', space=vmem, size = 0x12000, scoped, tag = 'internal scratch']
  %s0 = inlined_call_operand.hbm [shape: bf16[16,32], index: 0, kind: input, shape index: {}]
  %s1 = inlined_call_operand.hbm [shape: bf16[32,512], index: 1, kind: input, shape index: {}]
  %s2 = inlined_call_operand.hbm [shape: f32[8,128], index: 2, kind: input, shape index: {}]
  %s3 = inlined_call_operand.vmem [shape: f32[1,128], index: 3, kind: input, shape index: {}]
  %s4 = inlined_call_operand.hbm [shape: bf16[128,128], index: 4, kind: input, shape index: {}]
  %s5 = inlined_call_operand.vmem [shape: f32[1,128], index: 5, kind: input, shape index: {}]
  %s6 = inlined_call_operand.hbm [shape: f32[2,128], index: 6, kind: output, shape index: {}]
  %s7 = sld [smem:[#allocation0]]
  $region50: #{tpu_custom_call.1} parent=0
    _
  %s9 = ssub.s32 1, %s7
  %s10 = scalar_select 0, %s9, %s7
  $region1: #{tpu_custom_call.1} parent=0
    #allocation2 [shape = 'u8[4096]{0}', space=vmem, size = 0x1000, scoped, tag = 'input window, operand 0, single buffered']
    #allocation3 [shape = 's32[1]{0}', space=sflag, size = 0x4, scoped, tag = 'scoped memory for tpu_custom_call.1']
    #allocation4 [shape = 's32[1]{0}', space=sflag, size = 0x4, scoped, tag = 'scoped memory for tpu_custom_call.1']
    #allocation5 [shape = 'u8[32768]{0}', space=vmem, size = 0x8000, scoped, tag = 'input window, operand 1, single buffered']
    #allocation6 [shape = 's32[1]{0}', space=sflag, size = 0x4, scoped, tag = 'scoped memory for tpu_custom_call.1']
    #allocation7 [shape = 'u8[4096]{0}', space=vmem, size = 0x1000, scoped, tag = 'input window, operand 2, single buffered']
    #allocation8 [shape = 'u8[32768]{0}', space=vmem, size = 0x8000, scoped, tag = 'input window, operand 4, single buffered']
    #allocation9 [shape = 's32[1]{0}', space=sflag, size = 0x4, scoped, tag = 'scoped memory for tpu_custom_call.1']
    #allocation10 [shape = 'u8[1024]{0}', space=vmem, size = 0x400, scoped, tag = 'output window, operand 0, single buffered']
    %11 = vsyncpa [#allocation3], 0
    %12 = vsyncpa [#allocation6], 0
    %13 = vsyncpa [#allocation9], 0
    %14 = vsyncpa [#allocation4], 0
    // Predicated region
    $region2: #{tpu_custom_call.1} parent=1 // pred_check
      _
    $region3: #{tpu_custom_call.1} parent=1 // pred_check_branch
      %16 = sbr.rel (0) target = $region5
    $region4: #{tpu_custom_call.1} parent=1 // pred_region
      %s18 = ssub.s32 128, 128
      %19 = vsyncadd [#allocation3], %s18
      %s20 = sshll.u32 [#allocation2], 4
      %s21 = int_to_ptr.vmem [resolvable:$true] %s20
      %26 = dma.hbm_to_vmem [thread:$0]  %s0, 128, %s21, [#allocation3], 64, 64, 4
    $region5: #{tpu_custom_call.1} parent=1 // pred_fallthru
      _
    // Predicated region
    $region6: #{tpu_custom_call.1} parent=1 // pred_check
      _
    $region7: #{tpu_custom_call.1} parent=1 // pred_check_branch
      %28 = sbr.rel (0) target = $region9
    $region8: #{tpu_custom_call.1} parent=1 // pred_region
      %s30 = ssub.s32 1024, 1024
      %31 = vsyncadd [#allocation6], %s30
      %s32 = sshll.u32 [#allocation5], 4
      %s33 = int_to_ptr.vmem [resolvable:$true] %s32
      %38 = dma.hbm_to_vmem [thread:$0]  %s1, 1024, %s33, [#allocation6], 256, 256, 16
    $region9: #{tpu_custom_call.1} parent=1 // pred_fallthru
      _
    // Predicated region
    $region10: #{tpu_custom_call.1} parent=1 // pred_check
      _
    $region11: #{tpu_custom_call.1} parent=1 // pred_check_branch
      %40 = sbr.rel (0) target = $region13
    $region12: #{tpu_custom_call.1} parent=1 // pred_region
      %s42 = ssub.s32 128, 128
      %43 = vsyncadd [#allocation6], %s42
      %s45 = sshll.u32 [#allocation7], 4
      %s46 = int_to_ptr.vmem [resolvable:$true] %s45
      %48 = dma.hbm_to_vmem [thread:$0]  %s2, 128, %s46, [#allocation6]
    $region13: #{tpu_custom_call.1} parent=1 // pred_fallthru
      _
    // Predicated region
    $region14: #{tpu_custom_call.1} parent=1 // pred_check
      _
    $region15: #{tpu_custom_call.1} parent=1 // pred_check_branch
      %50 = sbr.rel (0) target = $region17
    $region16: #{tpu_custom_call.1} parent=1 // pred_region
      _
    $region17: #{tpu_custom_call.1} parent=1 // pred_fallthru
      _
    // Predicated region
    $region18: #{tpu_custom_call.1} parent=1 // pred_check
      _
    $region19: #{tpu_custom_call.1} parent=1 // pred_check_branch
      %52 = sbr.rel (0) target = $region21
    $region20: #{tpu_custom_call.1} parent=1 // pred_region
      %s54 = ssub.s32 1024, 1024
      %55 = vsyncadd [#allocation9], %s54
      %s56 = sshll.u32 [#allocation8], 4
      %s57 = int_to_ptr.vmem [resolvable:$true] %s56
      %62 = dma.hbm_to_vmem [thread:$0]  %s4, 1024, %s57, [#allocation9], 64, 64, 4
    $region21: #{tpu_custom_call.1} parent=1 // pred_fallthru
      _
    // Predicated region
    $region22: #{tpu_custom_call.1} parent=1 // pred_check
      _
    $region23: #{tpu_custom_call.1} parent=1 // pred_check_branch
      %64 = sbr.rel (0) target = $region25
    $region24: #{tpu_custom_call.1} parent=1 // pred_region
      _
    $region25: #{tpu_custom_call.1} parent=1 // pred_fallthru
      _
    // Predicated region
    $region26: #{tpu_custom_call.1} parent=1 // pred_check
      _
    $region27: #{tpu_custom_call.1} parent=1 // pred_check_branch
      %66 = sbr.rel (0) target = $region29
    $region28: #{tpu_custom_call.1} parent=1 // pred_region
      %67 = dma.done [#allocation3], 128
    $region29: #{tpu_custom_call.1} parent=1 // pred_fallthru
      _
    // Predicated region
    $region30: #{tpu_custom_call.1} parent=1 // pred_check
      _
    $region31: #{tpu_custom_call.1} parent=1 // pred_check_branch
      %69 = sbr.rel (0) target = $region33
    $region32: #{tpu_custom_call.1} parent=1 // pred_region
      %70 = dma.done [#allocation6], 1024
    $region33: #{tpu_custom_call.1} parent=1 // pred_fallthru
      _
    // Predicated region
    $region34: #{tpu_custom_call.1} parent=1 // pred_check
      _
    $region35: #{tpu_custom_call.1} parent=1 // pred_check_branch
      %72 = sbr.rel (0) target = $region37
    $region36: #{tpu_custom_call.1} parent=1 // pred_region
      %73 = dma.done [#allocation6], 128
    $region37: #{tpu_custom_call.1} parent=1 // pred_fallthru
      _
    // Predicated region
    $region38: #{tpu_custom_call.1} parent=1 // pred_check
      _
    $region39: #{tpu_custom_call.1} parent=1 // pred_check_branch
      %75 = sbr.rel (0) target = $region41
    $region40: #{tpu_custom_call.1} parent=1 // pred_region
      %76 = dma.done [#allocation9], 1024
    $region41: #{tpu_custom_call.1} parent=1 // pred_fallthru
      _
    %v78 = vld [vmem:[#allocation2] sm:$0xf]
    %v79 = vld [vmem:[#allocation2 + $0x4] sm:$0xf]
    %v80 = vld [vmem:[#allocation5] sm:$0xff]
    %v81 = vld [vmem:[#allocation5 + $0x8] sm:$0xff]
    %v82 = vld [vmem:[#allocation5 + $0x10] sm:$0xff]
    %v83 = vld [vmem:[#allocation5 + $0x18] sm:$0xff]
    %v84 = vld [vmem:[#allocation5 + $0x20] sm:$0xff]
    %v85 = vld [vmem:[#allocation5 + $0x28] sm:$0xff]
    %v86 = vld [vmem:[#allocation5 + $0x30] sm:$0xff]
    %v87 = vld [vmem:[#allocation5 + $0x38] sm:$0xff]
    %v90 = vunpack.c.l.b16 %v78
    %v91 = vunpack.c.l.b16 %v79
    %v92 = vpack.c.b16 %v91, %v90
    %v101 = vunpack.c.l.b16 %v80
    %v102 = vunpack.c.h.b16 %v80
    %v103 = vunpack.c.l.b16 %v81
    %v104 = vunpack.c.h.b16 %v81
    %v105 = vunpack.c.l.b16 %v82
    %v106 = vunpack.c.h.b16 %v82
    %v107 = vunpack.c.l.b16 %v83
    %v108 = vunpack.c.h.b16 %v83
    %v109 = vunpack.c.l.b16 %v84
    %v110 = vunpack.c.h.b16 %v84
    %v111 = vunpack.c.l.b16 %v85
    %v112 = vunpack.c.h.b16 %v85
    %v113 = vunpack.c.l.b16 %v86
    %v114 = vunpack.c.h.b16 %v86
    %v115 = vunpack.c.l.b16 %v87
    %v116 = vunpack.c.h.b16 %v87
    %v117 = vpack.c.b16 %v105, %v101
    %v118 = vpack.c.b16 %v106, %v102
    %v119 = vpack.c.b16 %v107, %v103
    %v120 = vpack.c.b16 %v108, %v104
    %v121 = vpack.c.b16 %v113, %v109
    %v122 = vpack.c.b16 %v114, %v110
    %v123 = vpack.c.b16 %v115, %v111
    %v124 = vpack.c.b16 %v116, %v112
    %vm133 = vcmask 261120
    %v135 = vsel %vm133, %v92, 0
    %137 = vmatprep.subr.bf16.mxu0 %v118
    %138 = vmatpush1.bf16.msra.mxu0 %v117
    %139 = vmatprep.subr.bf16.mxu0 %v122
    %140 = vmatpush1.bf16.msra.mxu0 %v121
    %141 = vmatprep.subr.bf16.mxu0 0
    %142 = vmatpush1.bf16.msra.mxu0 0
    %143 = vmatprep.subr.bf16.mxu0 0
    %144 = vmatpush1.bf16.msra.mxu0 0
    %145 = vmatprep.subr.bf16.mxu0 0
    %146 = vmatpush1.bf16.msra.mxu0 0
    %147 = vmatprep.subr.bf16.mxu0 0
    %148 = vmatpush1.bf16.msra.mxu0 0
    %149 = vmatprep.subr.bf16.mxu0 0
    %150 = vmatpush1.bf16.msra.mxu0 0
    %151 = vmatprep.subr.bf16.mxu0 0
    %152 = vmatpush1.bf16.msra.mxu0 0
    %153 = vmatprep.subr.bf16.mxu0 0
    %154 = vmatpush1.bf16.msra.mxu0 0
    %155 = vmatprep.subr.bf16.mxu0 0
    %156 = vmatpush1.bf16.msra.mxu0 0
    %157 = vmatprep.subr.bf16.mxu0 0
    %158 = vmatpush1.bf16.msra.mxu0 0
    %159 = vmatprep.subr.bf16.mxu0 0
    %160 = vmatpush1.bf16.msra.mxu0 0
    %161 = vmatprep.subr.bf16.mxu0 0
    %162 = vmatpush1.bf16.msra.mxu0 0
    %163 = vmatprep.subr.bf16.mxu0 0
    %164 = vmatpush1.bf16.msra.mxu0 0
    %165 = vmatprep.subr.bf16.mxu0 0
    %166 = vmatpush1.bf16.msra.mxu0 0
    %167 = vmatprep.subr.bf16.mxu0 0
    %168 = vmatpush1.bf16.msra.mxu0 0
    %169 = vmatprep.mubr.bf16.mxu0 0
    %170 = vmatmul.mubr.bf16.gmra.mrb[0].mxu0 %v135
    %v171 = vpop.f32.mrb[0].mxu0
    %v172 = vadd.f32 0.0, %v171
    %v173 = vpop.f32.mrb[0].mxu0
    %v174 = vadd.f32 0.0, %v173
    %v175 = vpop.f32.mrb[0].mxu0
    %v176 = vadd.f32 0.0, %v175
    %v177 = vpop.f32.mrb[0].mxu0
    %v178 = vadd.f32 0.0, %v177
    %179 = vdwg.mxu0
    %180 = vmatprep.subr.bf16.mxu0 %v120
    %181 = vmatpush1.bf16.msra.mxu0 %v119
    %182 = vmatprep.subr.bf16.mxu0 %v124
    %183 = vmatpush1.bf16.msra.mxu0 %v123
    %184 = vmatprep.subr.bf16.mxu0 0
    %185 = vmatpush1.bf16.msra.mxu0 0
    %186 = vmatprep.subr.bf16.mxu0 0
    %187 = vmatpush1.bf16.msra.mxu0 0
    %188 = vmatprep.subr.bf16.mxu0 0
    %189 = vmatpush1.bf16.msra.mxu0 0
    %190 = vmatprep.subr.bf16.mxu0 0
    %191 = vmatpush1.bf16.msra.mxu0 0
    %192 = vmatprep.subr.bf16.mxu0 0
    %193 = vmatpush1.bf16.msra.mxu0 0
    %194 = vmatprep.subr.bf16.mxu0 0
    %195 = vmatpush1.bf16.msra.mxu0 0
    %196 = vmatprep.subr.bf16.mxu0 0
    %197 = vmatpush1.bf16.msra.mxu0 0
    %198 = vmatprep.subr.bf16.mxu0 0
    %199 = vmatpush1.bf16.msra.mxu0 0
    %200 = vmatprep.subr.bf16.mxu0 0
    %201 = vmatpush1.bf16.msra.mxu0 0
    %202 = vmatprep.subr.bf16.mxu0 0
    %203 = vmatpush1.bf16.msra.mxu0 0
    %204 = vmatprep.subr.bf16.mxu0 0
    %205 = vmatpush1.bf16.msra.mxu0 0
    %206 = vmatprep.subr.bf16.mxu0 0
    %207 = vmatpush1.bf16.msra.mxu0 0
    %208 = vmatprep.subr.bf16.mxu0 0
    %209 = vmatpush1.bf16.msra.mxu0 0
    %210 = vmatprep.subr.bf16.mxu0 0
    %211 = vmatpush1.bf16.msra.mxu0 0
    %212 = vmatprep.mubr.bf16.mxu0 0
    %213 = vmatmul.mubr.bf16.gmra.mrb[0].mxu0 %v135
    %v214 = vpop.f32.mrb[0].mxu0
    %v215 = vadd.f32 0.0, %v214
    %v216 = vpop.f32.mrb[0].mxu0
    %v217 = vadd.f32 0.0, %v216
    %v218 = vpop.f32.mrb[0].mxu0
    %v219 = vadd.f32 0.0, %v218
    %v220 = vpop.f32.mrb[0].mxu0
    %v221 = vadd.f32 0.0, %v220
    %222 = vdwg.mxu0
    %v225 = vrot.slane %v174, 1
    %v226 = vrot.slane %v178, 1
    %vm229 = vcmask 1046528
    %v230 = vsel %vm229, %v225, %v225
    %v231 = vsel %vm229, %v226, %v226
    %v232 = vadd.f32 %v172, %v230
    %v233 = vadd.f32 %v176, %v231
    %v236 = vrot.slane %v215, 2
    %v237 = vrot.slane %v219, 2
    %vm240 = vcmask 1045504
    %v241 = vsel %vm240, %v236, %v236
    %v242 = vsel %vm240, %v237, %v237
    %v243 = vadd.f32 %v232, %v241
    %v244 = vadd.f32 %v233, %v242
    %v247 = vrot.slane %v217, 3
    %v248 = vrot.slane %v221, 3
    %vm251 = vcmask 1044480
    %v252 = vsel %vm251, %v247, %v247
    %v253 = vsel %vm251, %v248, %v248
    %v254 = vadd.f32 %v243, %v252
    %v255 = vadd.f32 %v244, %v253
    %v256 = vld [vmem:[#allocation7] sm:$0xff]
    %v257 = vadd.f32 %v254, %v256
    %v258 = vadd.f32 %v255, %v256
    %v259 = vrot.slane %v257, 4
    %v260 = vmax.f32 %v257, %v259
    %v261 = vrot.slane %v260, 2
    %v262 = vmax.f32 %v260, %v261
    %v263 = vrot.slane %v262, 1
    %v264 = vmax.f32 %v262, %v263
    %v265 = vrot.slane %v258, 4
    %v266 = vmax.f32 %v258, %v265
    %v267 = vrot.slane %v266, 2
    %v268 = vmax.f32 %v266, %v267
    %v269 = vrot.slane %v268, 1
    %v270 = vmax.f32 %v268, %v269
    %v271 = vld [vmem:[%s3] sm:$0x1]
    %v273 = vlaneseq
    %v274 = vshrl.u32 %v273, 7
    %v275 = vsub.s32 0, %v274
    %v276 = vrot.slane %v271, %v275
    %v278 = vadd.f32 %v264, %v276
    %v279 = vadd.f32 %v270, %v276
    %v280 = vmax.f32 %v278, 0.0
    %v281 = vmax.f32 %v279, 0.0
    %v282 = vpack.c.bf16 %v280, %v280
    %v283 = vpack.c.bf16 %v281, %v281
    %v284 = vld [vmem:[#allocation8] sm:$0xf]
    %v285 = vld [vmem:[#allocation8 + $0x4] sm:$0xf]
    %v286 = vld [vmem:[#allocation8 + $0x8] sm:$0xf]
    %v287 = vld [vmem:[#allocation8 + $0xc] sm:$0xf]
    %v288 = vld [vmem:[#allocation8 + $0x10] sm:$0xf]
    %v289 = vld [vmem:[#allocation8 + $0x14] sm:$0xf]
    %v290 = vld [vmem:[#allocation8 + $0x18] sm:$0xf]
    %v291 = vld [vmem:[#allocation8 + $0x1c] sm:$0xf]
    %v292 = vld [vmem:[#allocation8 + $0x20] sm:$0xf]
    %v293 = vld [vmem:[#allocation8 + $0x24] sm:$0xf]
    %v294 = vld [vmem:[#allocation8 + $0x28] sm:$0xf]
    %v295 = vld [vmem:[#allocation8 + $0x2c] sm:$0xf]
    %v296 = vld [vmem:[#allocation8 + $0x30] sm:$0xf]
    %v297 = vld [vmem:[#allocation8 + $0x34] sm:$0xf]
    %v298 = vld [vmem:[#allocation8 + $0x38] sm:$0xf]
    %v299 = vld [vmem:[#allocation8 + $0x3c] sm:$0xf]
    %v300 = vld [vmem:[%s5] sm:$0x1]
    %v302 = vlaneseq
    %v303 = vshrl.u32 %v302, 7
    %v304 = vsub.s32 0, %v303
    %v305 = vrot.slane %v300, %v304
    %v309 = vunpack.c.l.b16 %v282
    %v310 = vunpack.c.l.b16 %v283
    %v311 = vrot.slane %v310, 7
    %vm312 = vcmask 1041409
    %v313 = vsel %vm312, %v311, %v309
    %v314 = vpack.c.b16 %v313, %v313
    %v332 = vunpack.c.l.b16 %v284
    %v333 = vunpack.c.l.b16 %v285
    %v334 = vunpack.c.l.b16 %v286
    %v335 = vunpack.c.l.b16 %v287
    %v336 = vunpack.c.l.b16 %v288
    %v337 = vunpack.c.l.b16 %v289
    %v338 = vunpack.c.l.b16 %v290
    %v339 = vunpack.c.l.b16 %v291
    %v340 = vunpack.c.l.b16 %v292
    %v341 = vunpack.c.l.b16 %v293
    %v342 = vunpack.c.l.b16 %v294
    %v343 = vunpack.c.l.b16 %v295
    %v344 = vunpack.c.l.b16 %v296
    %v345 = vunpack.c.l.b16 %v297
    %v346 = vunpack.c.l.b16 %v298
    %v347 = vunpack.c.l.b16 %v299
    %v348 = vpack.c.b16 %v333, %v332
    %v349 = vpack.c.b16 %v335, %v334
    %v350 = vpack.c.b16 %v337, %v336
    %v351 = vpack.c.b16 %v339, %v338
    %v352 = vpack.c.b16 %v341, %v340
    %v353 = vpack.c.b16 %v343, %v342
    %v354 = vpack.c.b16 %v345, %v344
    %v355 = vpack.c.b16 %v347, %v346
    %364 = vmatprep.subr.bf16.mxu0 0
    %365 = vmatpush1.bf16.msra.mxu0 %v348
    %366 = vmatprep.subr.bf16.mxu0 0
    %367 = vmatpush1.bf16.msra.mxu0 %v349
    %368 = vmatprep.subr.bf16.mxu0 0
    %369 = vmatpush1.bf16.msra.mxu0 %v350
    %370 = vmatprep.subr.bf16.mxu0 0
    %371 = vmatpush1.bf16.msra.mxu0 %v351
    %372 = vmatprep.subr.bf16.mxu0 0
    %373 = vmatpush1.bf16.msra.mxu0 %v352
    %374 = vmatprep.subr.bf16.mxu0 0
    %375 = vmatpush1.bf16.msra.mxu0 %v353
    %376 = vmatprep.subr.bf16.mxu0 0
    %377 = vmatpush1.bf16.msra.mxu0 %v354
    %378 = vmatprep.subr.bf16.mxu0 0
    %379 = vmatpush1.bf16.msra.mxu0 %v355
    %380 = vmatprep.subr.bf16.mxu0 0
    %381 = vmatpush1.bf16.msra.mxu0 0
    %382 = vmatprep.subr.bf16.mxu0 0
    %383 = vmatpush1.bf16.msra.mxu0 0
    %384 = vmatprep.subr.bf16.mxu0 0
    %385 = vmatpush1.bf16.msra.mxu0 0
    %386 = vmatprep.subr.bf16.mxu0 0
    %387 = vmatpush1.bf16.msra.mxu0 0
    %388 = vmatprep.subr.bf16.mxu0 0
    %389 = vmatpush1.bf16.msra.mxu0 0
    %390 = vmatprep.subr.bf16.mxu0 0
    %391 = vmatpush1.bf16.msra.mxu0 0
    %392 = vmatprep.subr.bf16.mxu0 0
    %393 = vmatpush1.bf16.msra.mxu0 0
    %394 = vmatprep.subr.bf16.mxu0 0
    %395 = vmatpush1.bf16.msra.mxu0 0
    %396 = vmatprep.mubr.bf16.mxu0 0
    %397 = vmatmul.mubr.bf16.gmra.mrb[0].mxu0 %v314
    %v398 = vpop.f32.mrb[0].mxu0
    %v399 = vadd.f32 %v305, %v398
    %v400 = vpop.f32.mrb[0].mxu0
    %v401 = vpop.f32.mrb[0].mxu0
    %v402 = vpop.f32.mrb[0].mxu0
    %403 = vdwg.mxu0
    %404 = vst [vmem:[#allocation10] sm:$0x3] %v399
    // Predicated region
    $region42: #{tpu_custom_call.1} parent=1 // pred_check
      _
    $region43: #{tpu_custom_call.1} parent=1 // pred_check_branch
      %406 = sbr.rel (0) target = $region45
    $region44: #{tpu_custom_call.1} parent=1 // pred_region
      %s408 = ssub.s32 32, 32
      %409 = vsyncadd [#allocation4], %s408
      %s411 = sshll.u32 [#allocation10], 4
      %s412 = int_to_ptr.vmem [resolvable:$true] %s411
      %414 = dma.vmem_to_hbm [thread:$0]  %s412, 32, %s6, [#allocation4]
    $region45: #{tpu_custom_call.1} parent=1 // pred_fallthru
      _
    // Predicated region
    $region46: #{tpu_custom_call.1} parent=1 // pred_check
      _
    $region47: #{tpu_custom_call.1} parent=1 // pred_check_branch
      %416 = sbr.rel (0) target = $region49
    $region48: #{tpu_custom_call.1} parent=1 // pred_region
      %417 = dma.done [#allocation4], 32
    $region49: #{tpu_custom_call.1} parent=1 // pred_fallthru
      _
    %418 = vsyncpa [#allocation3], 1
    %419 = vsyncpa [#allocation6], 1
    %420 = vsyncpa [#allocation9], 1
    %421 = vsyncpa [#allocation4], 1

</llo_original>
